<compile_context>
chip_gen: v7x
topology: tpu7x:2x2x1
jax: 0.10.0
libtpu: 0.0.40
codegen_flags: <defaults>
</compile_context>

<pallas_src>
import functools

import jax
import jax.numpy as jnp
from jax.experimental import pallas as pl
from jax.experimental.pallas import tpu as pltpu


def _round_up(x, m):
    return ((x + m - 1) // m) * m


def _cdiv(a, b):
    return -(-a // b)


def _xcal_kernel(pred_ref, times_ref, dead_ref, bins_ref, out_ref,
                 *, half_gamma, n_total, tiles_per_p):
    """One tile of TILE_N samples; samples live on the lane axis.

    pred_ref : (K, TILE_N) f32/bf16  per-bin probabilities (transposed feed)
    times_ref: (1, TILE_N) i32       discretized event/censor times
    dead_ref : (1, TILE_N) f32       1 = event, 0 = censored
    bins_ref : (nbins, 4)  f32       cols = [0.5*gamma*bin_a_mod, bin_b_mod,
                                             bin_b_pre, bin_w]
    out_ref  : (1, nbins, 1) f32     per-bin partial sums for this parallel
                                     slice (accumulated across the inner axis)
    """
    p = pl.program_id(0)
    i = pl.program_id(1)

    @pl.when(i == 0)
    def _init():
        out_ref[...] = jnp.zeros_like(out_ref)

    pred = pred_ref[...].astype(jnp.float32)      # (K, TILE_N), math in f32
    times = times_ref[...]                        # (1, TILE_N) i32
    dead = dead_ref[...]                          # (1, TILE_N) f32
    K, tile_n = pred.shape

    # ---- get_cdf: cdf_i = sum_k pred[k, i] * (times[i] >= k) --------------
    k_idx = jax.lax.broadcasted_iota(jnp.int32, (K, tile_n), 0)
    mask2 = (times >= k_idx).astype(jnp.float32)              # (K, TILE_N)
    cdf = jnp.sum(pred * mask2, axis=0, keepdims=True)        # (1, TILE_N)

    # ---- valid-sample mask (ragged tail / over-provisioned grid) ----------
    col = jax.lax.broadcasted_iota(jnp.int32, (1, tile_n), 1)
    base = (p * tiles_per_p + i) * tile_n
    valid = (base + col) < n_total                            # (1, TILE_N) bool

    # ---- censored / uncensored per-sample weights --------------------------
    is_alive = 1.0 - dead
    new_is_alive = jnp.where(cdf > 1.0 - 1e-4, 0.0, is_alive)
    uncens = jnp.where(valid, 1.0 - new_is_alive, 0.0)        # (1, TILE_N)
    rci = jnp.maximum(1.0 - cdf, 0.0) + 1e-13                 # f32, clamped
    inv_rci = pl.reciprocal(rci, approx=False)                # (1, TILE_N)
    cens_over_rci = jnp.where(valid, new_is_alive * inv_rci, 0.0)

    # ---- bin constants as (nbins, 1) columns --------------------------------
    bins = bins_ref[...]                       # (nbins, 4)
    gha = bins[:, 0:1]                         # 0.5 * gamma * bin_a (first = -1)
    bin_b = bins[:, 1:2]                       # bin_b after the 2.0 edit
    bin_b_pre = bins[:, 2:3]                   # bin_b before the 2.0 edit
    bin_w = bins[:, 3:4]                       # bin widths

    # ---- soft D-calibration terms, all (nbins, TILE_N) ----------------------
    # sigmoid(x) == 0.5*tanh(x/2) + 0.5: one shared EUP tanh argument.
    hl = half_gamma * cdf - gha                # 0.5*gamma*(cdf - bin_a)
    up = bin_b - cdf
    sm = 0.5 * jnp.tanh(hl * up) + 0.5         # soft_membership
    ebn = 0.5 - 0.5 * jnp.tanh(hl)             # exact_bins_next

    a_term = uncens + cens_over_rci * (bin_b_pre - cdf)
    b_term = cens_over_rci * bin_w
    contrib = sm * a_term + ebn * b_term       # (nbins, TILE_N)

    # Per-tile cross-lane reduce (XLU slot) -> tiny per-bin accumulator.
    out_ref[...] += jnp.sum(contrib, axis=1, keepdims=True)[jnp.newaxis]


def _make_bins(nbins, key, differentiable=True):
    """Plain-JAX glue mirroring the bin construction in d_calibration."""
    bw = 1.0 / nbins
    bin_idx = jnp.arange(nbins, dtype=jnp.float32).reshape(1, -1)
    bin_a = bin_idx * bw
    noise = (1e-6 / nbins) * jax.random.uniform(key, (1, nbins), jnp.float32)
    if not differentiable:
        noise = noise * 0.0
    cum_noise = jnp.cumsum(noise, axis=1)
    bin_width = jnp.full((nbins,), bw, jnp.float32) + cum_noise     # (1, nbins)
    bin_b = bin_a + bin_width
    bin_b = bin_b / bin_b[:, -1]
    bin_a = bin_a.at[:, 1:].set(bin_b[:, :-1])
    bin_width = bin_b - bin_a                 # used for weights + final loss
    bin_b_pre = bin_b                         # before the 2.0 edit
    bin_b_mod = bin_b.at[:, -1].set(2.0)
    bin_a_mod = bin_a.at[:, 0].set(-1.0)
    return bin_a_mod, bin_b_mod, bin_b_pre, bin_width


def xcal_forward(pred_params, times, dead, *, num_dcal_bins, train_gamma,
                 noise_key, tile_n=4096, num_parallel=2, pred_feed_dtype=None):
    """XCAL forward loss.  pred_params: (N, K), times: (N,), dead: (N,).

    pred_feed_dtype=jnp.bfloat16 halves the dominant HBM stream (recommended
    on v5e); cdf math stays f32 inside the kernel either way.
    """
    N, K = pred_params.shape
    nbins = int(num_dcal_bins)
    gamma = float(train_gamma)

    # Lane-dense tiling over the sample axis (multiples of 128).
    tile_n = min(_round_up(max(N, 1), 128), _round_up(int(tile_n), 128))
    n_tiles = _cdiv(N, tile_n)
    p_eff = max(1, min(int(num_parallel), n_tiles))   # TC-parallel slices
    tiles_per_p = _cdiv(n_tiles, p_eff)
    n_cov = p_eff * tiles_per_p * tile_n              # samples covered by grid
    grid = (p_eff, tiles_per_p)

    bin_a, bin_b, bin_b_pre, bin_w = _make_bins(nbins, noise_key,
                                                differentiable=True)
    # Single constant block: cols = [0.5*gamma*bin_a, bin_b(mod), bin_b_pre, w]
    bins = jnp.stack([0.5 * gamma * bin_a[0], bin_b[0], bin_b_pre[0], bin_w[0]],
                     axis=1)                                     # (nbins, 4)

    feed_dtype = (jnp.dtype(pred_feed_dtype) if pred_feed_dtype is not None
                  else pred_params.dtype)
    # Transpose so the sample axis sits on lanes; zero-pad up to grid coverage
    # (padded columns are masked inside the kernel, n_total stays N).
    pred_t = jnp.pad(pred_params.astype(feed_dtype).T,
                     ((0, 0), (0, n_cov - N)))                   # (K, n_cov)
    times_t = jnp.pad(times.astype(jnp.int32).reshape(1, N),
                      ((0, 0), (0, n_cov - N)))                  # (1, n_cov)
    dead_t = jnp.pad(dead.astype(jnp.float32).reshape(1, N),
                     ((0, 0), (0, n_cov - N)))                   # (1, n_cov)

    kernel = functools.partial(_xcal_kernel, half_gamma=0.5 * gamma,
                               n_total=N, tiles_per_p=tiles_per_p)

    col_map = lambda p, i: (0, p * tiles_per_p + i)
    partial = pl.pallas_call(
        kernel,
        out_shape=jax.ShapeDtypeStruct((p_eff, nbins, 1), jnp.float32),
        grid=grid,
        in_specs=[
            pl.BlockSpec((K, tile_n), col_map),
            pl.BlockSpec((1, tile_n), col_map),
            pl.BlockSpec((1, tile_n), col_map),
            pl.BlockSpec((nbins, 4), lambda p, i: (0, 0)),
        ],
        out_specs=pl.BlockSpec((1, nbins, 1), lambda p, i: (p, 0, 0)),
        compiler_params=pltpu.CompilerParams(
            dimension_semantics=("parallel", "arbitrary"),
            vmem_limit_bytes=32 * 1024 * 1024,
        ),
    )(pred_t, times_t, dead_t, bins)

    # Finish the tiny reduction (nbins numbers) in plain JAX.
    frac = jnp.sum(partial[:, :, 0], axis=0) * (1.0 / N)         # (nbins,)
    return jnp.sum((frac - bin_w[0]) ** 2)


def _xcal_reference(pred_params, times, dead, bin_a, bin_b, bin_b_pre, bin_w,
                    gamma):
    """Pure-JAX reference of the same math (for a sanity check)."""
    N, K = pred_params.shape
    times = times.astype(jnp.int32).reshape(N, 1)
    dead = dead.astype(jnp.float32).reshape(N, 1)
    k_idx = jnp.arange(K, dtype=jnp.int32).reshape(1, -1)
    cdf = jnp.sum(pred_params * (times >= k_idx).astype(jnp.float32),
                  axis=-1, keepdims=True)
    is_alive = 1.0 - dead
    new_is_alive = jnp.where(cdf > 1.0 - 1e-4, 0.0, is_alive)
    cens, unc = new_is_alive, 1.0 - new_is_alive
    lo = cdf - bin_a
    up = bin_b - cdf
    sm = jax.nn.sigmoid(gamma * lo * up)
    ebn = jax.nn.sigmoid(-gamma * lo)
    rci = 1.0 - cdf + 1e-13
    full = jnp.sum(cens * ebn * bin_w / rci, axis=0)
    part = jnp.sum(cens * (bin_b_pre - cdf) * sm / rci, axis=0)
    frac = jnp.sum(unc * sm, axis=0)
    fib = (frac + full + part) / N
    return jnp.sum((fib - bin_w) ** 2)


if __name__ == "__main__":
    # Hyperparameters of XCAL(num_dcal_bins, train_gamma)
    NUM_DCAL_BINS = 20
    TRAIN_GAMMA = 10.0

    key = jax.random.PRNGKey(0)
    k_pred, k_times, k_dead, k_noise, k_rest = jax.random.split(key, 5)

    # --- small demo: N samples, K discrete time bins -----------------------
    N, K = 8, 16
    pred_params = jax.nn.softmax(
        jax.random.normal(k_pred, (N, K), jnp.float32), axis=-1)
    times = jax.random.randint(k_times, (N,), 0, K, jnp.int32)
    dead = jax.random.bernoulli(k_dead, 0.5, (N,)).astype(jnp.float32)

    loss = xcal_forward(pred_params, times, dead,
                        num_dcal_bins=NUM_DCAL_BINS,
                        train_gamma=TRAIN_GAMMA,
                        noise_key=k_noise)
    loss = jax.block_until_ready(loss)

    bin_a, bin_b, bin_b_pre, bin_w = _make_bins(NUM_DCAL_BINS, k_noise, True)
    ref = _xcal_reference(pred_params, times, dead,
                          bin_a, bin_b, bin_b_pre, bin_w, TRAIN_GAMMA)
    assert jnp.abs(loss - ref) < 2e-3 + 5e-3 * jnp.abs(ref), (loss, ref)

    # --- second check: ragged multi-tile grid + 2-way parallel sample split -
    N2 = 300
    kp2, kt2, kd2 = jax.random.split(k_rest, 3)
    pred2 = jax.nn.softmax(jax.random.normal(kp2, (N2, K), jnp.float32), axis=-1)
    times2 = jax.random.randint(kt2, (N2,), 0, K, jnp.int32)
    dead2 = jax.random.bernoulli(kd2, 0.5, (N2,)).astype(jnp.float32)

    loss2 = xcal_forward(pred2, times2, dead2,
                         num_dcal_bins=NUM_DCAL_BINS,
                         train_gamma=TRAIN_GAMMA,
                         noise_key=k_noise,
                         tile_n=128, num_parallel=2)
    loss2 = jax.block_until_ready(loss2)
    ref2 = _xcal_reference(pred2, times2, dead2,
                           bin_a, bin_b, bin_b_pre, bin_w, TRAIN_GAMMA)
    assert jnp.abs(loss2 - ref2) < 2e-3 + 5e-3 * jnp.abs(ref2), (loss2, ref2)

    print("KERNEL_OK")
</pallas_src>

<mosaic_0001>
module attributes {stable_mosaic.version = 11 : i64} {
  func.func @_xcal_kernel(%arg0: i32, %arg1: i32, %arg2: memref<16x128xf32, #tpu.memory_space<vmem>>, %arg3: memref<1x128xi32, #tpu.memory_space<vmem>>, %arg4: memref<1x128xf32, #tpu.memory_space<vmem>>, %arg5: memref<20x4xf32, #tpu.memory_space<vmem>>, %arg6: memref<1x20x1xf32, #tpu.memory_space<vmem>>) attributes {dimension_semantics = [#tpu.dimension_semantics<parallel>, #tpu.dimension_semantics<arbitrary>], iteration_bounds = array<i64: 1, 1>, scalar_prefetch = 0 : i64, scratch_operands = 0 : i64, tpu.core_type = #tpu.core_type<tc>, window_params = [{transform_indices = @transform_0, window_bounds = array<i64: 16, 128>}, {transform_indices = @transform_1, window_bounds = array<i64: 1, 128>}, {transform_indices = @transform_2, window_bounds = array<i64: 1, 128>}, {pipeline_mode = #tpu.pipeline_mode<synchronous>, transform_indices = @transform_3, window_bounds = array<i64: 20, 4>}, {transform_indices = @transform_4, window_bounds = array<i64: 1, 20, 1>}]} {
    %c0_i32 = arith.constant 0 : i32
    %0 = arith.cmpi eq, %arg1, %c0_i32 : i32
    %1 = arith.extui %0 : i1 to i32
    %c0_i32_0 = arith.constant 0 : i32
    %2 = arith.cmpi ne, %1, %c0_i32_0 : i32
    scf.if %2 {
      %cst_29 = arith.constant 0.000000e+00 : f32
      %85 = vector.broadcast %cst_29 : f32 to vector<1x20x1xf32>
      %c0_30 = arith.constant 0 : index
      %c0_31 = arith.constant 0 : index
      %c0_32 = arith.constant 0 : index
      %86 = vector.load %arg6[%c0_30, %c0_31, %c0_32] : memref<1x20x1xf32, #tpu.memory_space<vmem>>, vector<1x20x1xf32>
      tpu.vector_store %arg6[%c0_30, %c0_31, %c0_32], %85 {strides = array<i32>} : memref<1x20x1xf32, #tpu.memory_space<vmem>>, vector<1x20x1xf32>,
    } else {
    }
    %c0 = arith.constant 0 : index
    %c0_1 = arith.constant 0 : index
    %3 = vector.load %arg2[%c0, %c0_1] : memref<16x128xf32, #tpu.memory_space<vmem>>, vector<16x128xf32>
    %c0_2 = arith.constant 0 : index
    %c0_3 = arith.constant 0 : index
    %4 = vector.load %arg3[%c0_2, %c0_3] : memref<1x128xi32, #tpu.memory_space<vmem>>, vector<1x128xi32>
    %c0_4 = arith.constant 0 : index
    %c0_5 = arith.constant 0 : index
    %5 = vector.load %arg4[%c0_4, %c0_5] : memref<1x128xf32, #tpu.memory_space<vmem>>, vector<1x128xf32>
    %6 = tpu.iota {dimensions = array<i32: 0>} : vector<16x128xi32>
    %7 = vector.broadcast %4 : vector<1x128xi32> to vector<16x128xi32>
    %8 = arith.cmpi sge, %7, %6 : vector<16x128xi32>
    %9 = arith.extui %8 : vector<16x128xi1> to vector<16x128xi32>
    %10 = arith.sitofp %9 : vector<16x128xi32> to vector<16x128xf32>
    %11 = arith.mulf %3, %10 : vector<16x128xf32>
    %cst = arith.constant dense<0.000000e+00> : vector<128xf32>
    %12 = vector.multi_reduction <add>, %11, %cst [0] : vector<16x128xf32> to vector<128xf32>
    %13 = vector.shape_cast %12 : vector<128xf32> to vector<1x128xf32>
    %14 = tpu.iota {dimensions = array<i32: 1>} : vector<1x128xi32>
    %c1_i32 = arith.constant 1 : i32
    %15 = arith.muli %arg0, %c1_i32 : i32
    %16 = arith.addi %15, %arg1 : i32
    %c128_i32 = arith.constant 128 : i32
    %17 = arith.muli %16, %c128_i32 : i32
    %18 = vector.broadcast %17 : i32 to vector<1x128xi32>
    %19 = arith.addi %18, %14 : vector<1x128xi32>
    %c8_i32 = arith.constant 8 : i32
    %20 = vector.broadcast %c8_i32 : i32 to vector<1x128xi32>
    %21 = arith.cmpi slt, %19, %20 : vector<1x128xi32>
    %cst_6 = arith.constant 1.000000e+00 : f32
    %22 = vector.broadcast %cst_6 : f32 to vector<1x128xf32>
    %23 = arith.subf %22, %5 : vector<1x128xf32>
    %cst_7 = arith.constant 0.999899983 : f32
    %24 = vector.broadcast %cst_7 : f32 to vector<1x128xf32>
    %25 = arith.cmpf ogt, %13, %24 : vector<1x128xf32>
    %cst_8 = arith.constant 0.000000e+00 : f32
    %26 = vector.broadcast %cst_8 : f32 to vector<1x128xf32>
    %27 = arith.select %25, %26, %23 : vector<1x128xi1>, vector<1x128xf32>
    %cst_9 = arith.constant 1.000000e+00 : f32
    %28 = vector.broadcast %cst_9 : f32 to vector<1x128xf32>
    %29 = arith.subf %28, %27 : vector<1x128xf32>
    %cst_10 = arith.constant 0.000000e+00 : f32
    %30 = vector.broadcast %cst_10 : f32 to vector<1x128xf32>
    %31 = arith.select %21, %29, %30 : vector<1x128xi1>, vector<1x128xf32>
    %cst_11 = arith.constant 1.000000e+00 : f32
    %32 = vector.broadcast %cst_11 : f32 to vector<1x128xf32>
    %33 = arith.subf %32, %13 : vector<1x128xf32>
    %cst_12 = arith.constant 0.000000e+00 : f32
    %34 = vector.broadcast %cst_12 : f32 to vector<1x128xf32>
    %35 = arith.maximumf %33, %34 : vector<1x128xf32>
    %cst_13 = arith.constant 9.99999982E-14 : f32
    %36 = vector.broadcast %cst_13 : f32 to vector<1x128xf32>
    %37 = arith.addf %35, %36 : vector<1x128xf32>
    %38 = tpu.reciprocal %37 : vector<1x128xf32> -> vector<1x128xf32>
    %39 = arith.mulf %27, %38 : vector<1x128xf32>
    %cst_14 = arith.constant 0.000000e+00 : f32
    %40 = vector.broadcast %cst_14 : f32 to vector<1x128xf32>
    %41 = arith.select %21, %39, %40 : vector<1x128xi1>, vector<1x128xf32>
    %c0_15 = arith.constant 0 : index
    %c0_16 = arith.constant 0 : index
    %42 = vector.load %arg5[%c0_15, %c0_16] : memref<20x4xf32, #tpu.memory_space<vmem>>, vector<20x4xf32>
    %43 = vector.extract_strided_slice %42 {offsets = [0, 0], sizes = [20, 1], strides = [1, 1]} : vector<20x4xf32> to vector<20x1xf32>
    %44 = vector.extract_strided_slice %42 {offsets = [0, 1], sizes = [20, 1], strides = [1, 1]} : vector<20x4xf32> to vector<20x1xf32>
    %45 = vector.extract_strided_slice %42 {offsets = [0, 2], sizes = [20, 1], strides = [1, 1]} : vector<20x4xf32> to vector<20x1xf32>
    %46 = vector.extract_strided_slice %42 {offsets = [0, 3], sizes = [20, 1], strides = [1, 1]} : vector<20x4xf32> to vector<20x1xf32>
    %cst_17 = arith.constant 5.000000e+00 : f32
    %47 = vector.broadcast %cst_17 : f32 to vector<1x128xf32>
    %48 = arith.mulf %47, %13 : vector<1x128xf32>
    %49 = vector.broadcast %48 : vector<1x128xf32> to vector<20x128xf32>
    %50 = vector.broadcast %43 : vector<20x1xf32> to vector<20x128xf32>
    %51 = arith.subf %49, %50 : vector<20x128xf32>
    %52 = vector.broadcast %44 : vector<20x1xf32> to vector<20x128xf32>
    %53 = vector.broadcast %13 : vector<1x128xf32> to vector<20x128xf32>
    %54 = arith.subf %52, %53 : vector<20x128xf32>
    %55 = arith.mulf %51, %54 : vector<20x128xf32>
    %56 = math.tanh %55 : vector<20x128xf32>
    %cst_18 = arith.constant 5.000000e-01 : f32
    %57 = vector.broadcast %cst_18 : f32 to vector<20x128xf32>
    %58 = arith.mulf %57, %56 : vector<20x128xf32>
    %cst_19 = arith.constant 5.000000e-01 : f32
    %59 = vector.broadcast %cst_19 : f32 to vector<20x128xf32>
    %60 = arith.addf %58, %59 : vector<20x128xf32>
    %61 = math.tanh %51 : vector<20x128xf32>
    %cst_20 = arith.constant 5.000000e-01 : f32
    %62 = vector.broadcast %cst_20 : f32 to vector<20x128xf32>
    %63 = arith.mulf %62, %61 : vector<20x128xf32>
    %cst_21 = arith.constant 5.000000e-01 : f32
    %64 = vector.broadcast %cst_21 : f32 to vector<20x128xf32>
    %65 = arith.subf %64, %63 : vector<20x128xf32>
    %66 = vector.broadcast %45 : vector<20x1xf32> to vector<20x128xf32>
    %67 = vector.broadcast %13 : vector<1x128xf32> to vector<20x128xf32>
    %68 = arith.subf %66, %67 : vector<20x128xf32>
    %69 = vector.broadcast %41 : vector<1x128xf32> to vector<20x128xf32>
    %70 = arith.mulf %69, %68 : vector<20x128xf32>
    %71 = vector.broadcast %31 : vector<1x128xf32> to vector<20x128xf32>
    %72 = arith.addf %71, %70 : vector<20x128xf32>
    %73 = vector.broadcast %41 : vector<1x128xf32> to vector<20x128xf32>
    %74 = vector.broadcast %46 : vector<20x1xf32> to vector<20x128xf32>
    %75 = arith.mulf %73, %74 : vector<20x128xf32>
    %76 = arith.mulf %60, %72 : vector<20x128xf32>
    %77 = arith.mulf %65, %75 : vector<20x128xf32>
    %78 = arith.addf %76, %77 : vector<20x128xf32>
    %c0_22 = arith.constant 0 : index
    %c0_23 = arith.constant 0 : index
    %c0_24 = arith.constant 0 : index
    %79 = vector.load %arg6[%c0_22, %c0_23, %c0_24] : memref<1x20x1xf32, #tpu.memory_space<vmem>>, vector<1x20x1xf32>
    %cst_25 = arith.constant dense<0.000000e+00> : vector<20xf32>
    %80 = vector.multi_reduction <add>, %78, %cst_25 [1] : vector<20x128xf32> to vector<20xf32>
    %81 = vector.shape_cast %80 : vector<20xf32> to vector<20x1xf32>
    %82 = vector.shape_cast %81 : vector<20x1xf32> to vector<1x20x1xf32>
    %83 = arith.addf %79, %82 : vector<1x20x1xf32>
    %c0_26 = arith.constant 0 : index
    %c0_27 = arith.constant 0 : index
    %c0_28 = arith.constant 0 : index
    %84 = vector.load %arg6[%c0_26, %c0_27, %c0_28] : memref<1x20x1xf32, #tpu.memory_space<vmem>>, vector<1x20x1xf32>
    tpu.vector_store %arg6[%c0_26, %c0_27, %c0_28], %83 {strides = array<i32>} : memref<1x20x1xf32, #tpu.memory_space<vmem>>, vector<1x20x1xf32>,
    return
  }
  func.func @transform_0(%arg0: i32, %arg1: i32) -> (i32, i32) {
    %c1_i32 = arith.constant 1 : i32
    %0 = arith.muli %arg0, %c1_i32 : i32
    %1 = arith.addi %0, %arg1 : i32
    %c0_i32 = arith.constant 0 : i32
    %c0_i32_0 = arith.constant 0 : i32
    return %c0_i32, %1 : i32, i32
  }
  func.func @transform_1(%arg0: i32, %arg1: i32) -> (i32, i32) {
    %c1_i32 = arith.constant 1 : i32
    %0 = arith.muli %arg0, %c1_i32 : i32
    %1 = arith.addi %0, %arg1 : i32
    %c0_i32 = arith.constant 0 : i32
    %c0_i32_0 = arith.constant 0 : i32
    return %c0_i32, %1 : i32, i32
  }
  func.func @transform_2(%arg0: i32, %arg1: i32) -> (i32, i32) {
    %c1_i32 = arith.constant 1 : i32
    %0 = arith.muli %arg0, %c1_i32 : i32
    %1 = arith.addi %0, %arg1 : i32
    %c0_i32 = arith.constant 0 : i32
    %c0_i32_0 = arith.constant 0 : i32
    return %c0_i32, %1 : i32, i32
  }
  func.func @transform_3(%arg0: i32, %arg1: i32) -> (i32, i32) {
    %c0_i32 = arith.constant 0 : i32
    %c0_i32_0 = arith.constant 0 : i32
    %c0_i32_1 = arith.constant 0 : i32
    return %c0_i32, %c0_i32_0 : i32, i32
  }
  func.func @transform_4(%arg0: i32, %arg1: i32) -> (i32, i32, i32) {
    %c0_i32 = arith.constant 0 : i32
    %c0_i32_0 = arith.constant 0 : i32
    %c0_i32_1 = arith.constant 0 : i32
    return %arg0, %c0_i32, %c0_i32_0 : i32, i32, i32
  }
}

</mosaic_0001>

<llo_original>
// kernel: tpu_custom_call.1
$region0: #{tpu_custom_call.1}
  #allocation0 [shape = 'u32[]', space=smem, size = 0x4, offset = 0x4, fixed_abs, tag = 'smem constant byte address 0x4 - core index']
  #allocation1 [shape = 'u32[144,128]{1,0:T(1,128)}', space=vmem, size = 0x12000, scoped, tag = 'internal scratch']
  %s0 = inlined_call_operand.vmem [shape: f32[16,128], index: 0, kind: input, shape index: {}]
  %s1 = inlined_call_operand.vmem [shape: s32[1,128], index: 1, kind: input, shape index: {}]
  %s2 = inlined_call_operand.vmem [shape: f32[1,128], index: 2, kind: input, shape index: {}]
  %s3 = inlined_call_operand.vmem [shape: f32[20,4], index: 3, kind: input, shape index: {}]
  %s4 = inlined_call_operand.vmem [shape: f32[1,20,1], index: 4, kind: output, shape index: {}]
  %s5 = sld [smem:[#allocation0]]
  $region30: #{tpu_custom_call.1} parent=0
    _
  %s7 = ssub.s32 1, %s5
  %s8 = scalar_select 0, %s7, %s5
  // Predicated region
  $region2: #{tpu_custom_call.1} parent=0 // pred_check
    _
  $region3: #{tpu_custom_call.1} parent=0 // pred_check_branch
    %10 = sbr.rel (0) target = $region5
  $region4: #{tpu_custom_call.1} parent=0 // pred_region
    %s11 = sadd.s32 0, 0
    %p12 = scmp.lt.s32.totalorder %s11, 0
    %s13 = scalar_select %p12, %s11, 0
    %s14 = smul.addr %s13, 8
    %s15 = scalar_lea.vmem %s0, %s14
    %s16 = sadd.s32 0, 0
  $region5: #{tpu_custom_call.1} parent=0 // pred_fallthru
    _
  // Predicated region
  $region6: #{tpu_custom_call.1} parent=0 // pred_check
    _
  $region7: #{tpu_custom_call.1} parent=0 // pred_check_branch
    %18 = sbr.rel (0) target = $region9
  $region8: #{tpu_custom_call.1} parent=0 // pred_region
    %s19 = sadd.s32 0, 0
    %p20 = scmp.lt.s32.totalorder %s19, 0
    %s21 = scalar_select %p20, %s19, 0
    %s22 = scalar_lea.vmem %s1, %s21
    %s23 = sadd.s32 0, 0
  $region9: #{tpu_custom_call.1} parent=0 // pred_fallthru
    _
  // Predicated region
  $region10: #{tpu_custom_call.1} parent=0 // pred_check
    _
  $region11: #{tpu_custom_call.1} parent=0 // pred_check_branch
    %25 = sbr.rel (0) target = $region13
  $region12: #{tpu_custom_call.1} parent=0 // pred_region
    %s26 = sadd.s32 0, 0
    %p27 = scmp.lt.s32.totalorder %s26, 0
    %s28 = scalar_select %p27, %s26, 0
    %s29 = scalar_lea.vmem %s2, %s28
    %s30 = sadd.s32 0, 0
  $region13: #{tpu_custom_call.1} parent=0 // pred_fallthru
    _
  // Predicated region
  $region14: #{tpu_custom_call.1} parent=0 // pred_check
    _
  $region15: #{tpu_custom_call.1} parent=0 // pred_check_branch
    %32 = sbr.rel (0) target = $region17
  $region16: #{tpu_custom_call.1} parent=0 // pred_region
    _
  $region17: #{tpu_custom_call.1} parent=0 // pred_fallthru
    _
  %s33 = sadd.s32 0, 0
  %p34 = scmp.lt.s32.totalorder %s33, 0
  %s35 = scalar_select %p34, %s33, 0
  %s36 = smul.addr %s35, 8
  %s37 = scalar_lea.vmem %s0, %s36
  %s38 = sadd.s32 0, 0
  %p39 = scmp.lt.s32.totalorder %s38, 0
  %s40 = scalar_select %p39, %s38, 0
  %s41 = scalar_lea.vmem %s1, %s40
  %s42 = sadd.s32 0, 0
  %p43 = scmp.lt.s32.totalorder %s42, 0
  %s44 = scalar_select %p43, %s42, 0
  %s45 = scalar_lea.vmem %s2, %s44
  %s46 = sadd.s32 0, 0
  %p47 = scmp.lt.s32.totalorder %s46, 0
  %s48 = scalar_select %p47, %s46, 0
  %s49 = smul.addr %s48, 8
  %s50 = scalar_lea.vmem %s0, %s49
  %s51 = sadd.s32 0, 0
  %s52 = sadd.s32 0, 0
  %p53 = scmp.lt.s32.totalorder %s52, 0
  %s54 = scalar_select %p53, %s52, 0
  %s55 = scalar_lea.vmem %s1, %s54
  %s56 = sadd.s32 0, 0
  %s57 = sadd.s32 0, 0
  %p58 = scmp.lt.s32.totalorder %s57, 0
  %s59 = scalar_select %p58, %s57, 0
  %s60 = scalar_lea.vmem %s2, %s59
  %s61 = sadd.s32 0, 0
  %p62 = scmp.eq.s32.totalorder 0, 0
  // Predicated region
  $region18: #{tpu_custom_call.1} parent=0 // pred_check
    %p63 = pneg %p62
  $region19: #{tpu_custom_call.1} parent=0 // pred_check_branch
    %65 = sbr.rel (%p63) target = $region21
  $region20: #{tpu_custom_call.1} parent=0 // pred_region
    %vm66 = vcmask 7168
    %67 = vst.msk [vmem:[%s4] sm:$0xff] %vm66, 0.0
    %68 = vst.msk [vmem:[%s4 + $0x8] sm:$0xff] %vm66, 0.0
    %vm69 = vcmask 3072
    %70 = vst.msk [vmem:[%s4 + $0x10] sm:$0xf] %vm69, 0.0
  $region21: #{tpu_custom_call.1} parent=0 // pred_fallthru
    _
  %v71 = vld [vmem:[%s50] sm:$0xff]
  %v72 = vld [vmem:[%s50 + $0x8] sm:$0xff]
  %v73 = vld [vmem:[%s55] sm:$0x1]
  %v74 = vld [vmem:[%s60] sm:$0x1]
  %v75 = vlaneseq
  %v76 = vshrl.u32 %v75, 7
  %v77 = vadd.s32 %v76, 8
  %v78 = vlaneseq
  %v79 = vshrl.u32 %v78, 7
  %v80 = vsub.s32 0, %v79
  %v81 = vrot.slane %v73, %v80
  %vm82 = vcmp.ge.s32.totalorder %v81, %v76
  %vm83 = vcmp.ge.s32.totalorder %v81, %v77
  %v84 = vsel %vm82, 1, 0
  %v85 = vsel %vm83, 1, 0
  %v86 = vcvt.s32.f32 %v84
  %v87 = vcvt.s32.f32 %v85
  %v88 = vmul.f32 %v71, %v86
  %v89 = vmul.f32 %v72, %v87
  %v90 = vadd.f32 %v88, %v89
  %v91 = vrot.slane %v90, 4
  %v92 = vadd.f32 %v90, %v91
  %v93 = vrot.slane %v92, 2
  %v94 = vadd.f32 %v92, %v93
  %v95 = vrot.slane %v94, 1
  %v96 = vadd.f32 %v94, %v95
  %v97 = vlaneseq
  %v98 = vand.u32 %v97, 127
  %s99 = sadd.s32 0, 0
  %s100 = smul.u32 %s99, 128
  %v101 = vstv %s100
  %v102 = vadd.s32 %v101, %v98
  %vm103 = vcmp.lt.s32.totalorder %v102, 8
  %v104 = vsub.f32 1.0, %v74
  %vm105 = vcmp.gt.f32.partialorder %v96, 0.9999
  %v106 = vsel %vm105, 0.0, %v104
  %v107 = vsub.f32 1.0, %v106
  %v108 = vsel %vm103, %v107, 0.0
  %v109 = vsub.f32 1.0, %v96
  %v110 = vmax.f32 %v109, 0.0
  %v111 = vadd.f32 %v110, 1e-13
  %v112 = vrcp.pop %v111
  %v113 = vmul.f32 %v106, %v112
  %v114 = vsel %vm103, %v113, 0.0
  %v115 = vld [vmem:[%s3] sm:$0xff]
  %v116 = vld [vmem:[%s3 + $0x8] sm:$0xff]
  %v117 = vld [vmem:[%s3 + $0x10] sm:$0xf]
  %v118 = vmul.f32 %v96, 5.0
  %120 = vset.pattern.permute.xlu0 0
  %121 = vperm.xlu0 %120, %v115
  %v122 = vpop.permute.xlu0 %121
  %125 = vset.pattern.permute.xlu0 0
  %126 = vperm.xlu0 %125, %v116
  %v127 = vpop.permute.xlu0 %126
  %130 = vset.pattern.permute.xlu0 0
  %131 = vperm.xlu0 %130, %v117
  %v132 = vpop.permute.xlu0 %131
  %v134 = vsub.f32 %v118, %v122
  %v135 = vsub.f32 %v118, %v127
  %v136 = vsub.f32 %v118, %v132
  %137 = vset.pattern.permute.xlu0 1
  %138 = vperm.xlu0 %137, %v115
  %v139 = vpop.permute.xlu0 %138
  %141 = vset.pattern.permute.xlu0 1
  %142 = vperm.xlu0 %141, %v116
  %v143 = vpop.permute.xlu0 %142
  %145 = vset.pattern.permute.xlu0 1
  %146 = vperm.xlu0 %145, %v117
  %v147 = vpop.permute.xlu0 %146
  %v149 = vsub.f32 %v139, %v96
  %v150 = vsub.f32 %v143, %v96
  %v151 = vsub.f32 %v147, %v96
  %v152 = vmul.f32 %v134, %v149
  %v153 = vmul.f32 %v135, %v150
  %v154 = vmul.f32 %v136, %v151
  %v155 = vtanh.pop %v152
  %v156 = vtanh.pop %v153
  %v157 = vtanh.pop %v154
  %v158 = vmul.f32 %v155, 0.5
  %v159 = vmul.f32 %v156, 0.5
  %v160 = vmul.f32 %v157, 0.5
  %v161 = vadd.f32 %v158, 0.5
  %v162 = vadd.f32 %v159, 0.5
  %v163 = vadd.f32 %v160, 0.5
  %v164 = vtanh.pop %v134
  %v165 = vtanh.pop %v135
  %v166 = vtanh.pop %v136
  %v167 = vmul.f32 %v164, 0.5
  %v168 = vmul.f32 %v165, 0.5
  %v169 = vmul.f32 %v166, 0.5
  %v170 = vsub.f32 0.5, %v167
  %v171 = vsub.f32 0.5, %v168
  %v172 = vsub.f32 0.5, %v169
  %173 = vset.pattern.permute.xlu0 2
  %174 = vperm.xlu0 %173, %v115
  %v175 = vpop.permute.xlu0 %174
  %177 = vset.pattern.permute.xlu0 2
  %178 = vperm.xlu0 %177, %v116
  %v179 = vpop.permute.xlu0 %178
  %181 = vset.pattern.permute.xlu0 2
  %182 = vperm.xlu0 %181, %v117
  %v183 = vpop.permute.xlu0 %182
  %v185 = vsub.f32 %v175, %v96
  %v186 = vsub.f32 %v179, %v96
  %v187 = vsub.f32 %v183, %v96
  %v188 = vlaneseq
  %v189 = vshrl.u32 %v188, 7
  %v190 = vsub.s32 0, %v189
  %v191 = vrot.slane %v114, %v190
  %v192 = vmul.f32 %v191, %v185
  %v193 = vmul.f32 %v191, %v186
  %v194 = vmul.f32 %v191, %v187
  %v195 = vlaneseq
  %v196 = vshrl.u32 %v195, 7
  %v197 = vsub.s32 0, %v196
  %v198 = vrot.slane %v108, %v197
  %v199 = vadd.f32 %v198, %v192
  %v200 = vadd.f32 %v198, %v193
  %v201 = vadd.f32 %v198, %v194
  %202 = vset.pattern.permute.xlu0 3
  %203 = vperm.xlu0 %202, %v115
  %v204 = vpop.permute.xlu0 %203
  %206 = vset.pattern.permute.xlu0 3
  %207 = vperm.xlu0 %206, %v116
  %v208 = vpop.permute.xlu0 %207
  %210 = vset.pattern.permute.xlu0 3
  %211 = vperm.xlu0 %210, %v117
  %v212 = vpop.permute.xlu0 %211
  %v214 = vmul.f32 %v191, %v204
  %v215 = vmul.f32 %v191, %v208
  %v216 = vmul.f32 %v191, %v212
  %v217 = vmul.f32 %v161, %v199
  %v218 = vmul.f32 %v162, %v200
  %v219 = vmul.f32 %v163, %v201
  %v220 = vmul.f32 %v170, %v214
  %v221 = vmul.f32 %v171, %v215
  %v222 = vmul.f32 %v172, %v216
  %v223 = vadd.f32 %v217, %v220
  %v224 = vadd.f32 %v218, %v221
  %v225 = vadd.f32 %v219, %v222
  %v226 = vld [vmem:[%s4] sm:$0xff]
  %v227 = vld [vmem:[%s4 + $0x8] sm:$0xff]
  %v228 = vld [vmem:[%s4 + $0x10] sm:$0xf]
  %229 = vadd.xlane.f32.xlu0 %v223
  %v230 = vpop.xlane.xlu0 %229
  %231 = vadd.xlane.f32.xlu0 %v224
  %v232 = vpop.xlane.xlu0 %231
  %vm233 = vcmask 1043456
  %v234 = vsel %vm233, %v225, 0.0
  %235 = vadd.xlane.f32.xlu0 %v234
  %v236 = vpop.xlane.xlu0 %235
  %v237 = vadd.f32 %v226, %v230
  %v238 = vadd.f32 %v227, %v232
  %v239 = vadd.f32 %v228, %v236
  %vm240 = vcmask 7168
  %241 = vst.msk [vmem:[%s4] sm:$0xff] %vm240, %v237
  %242 = vst.msk [vmem:[%s4 + $0x8] sm:$0xff] %vm240, %v238
  %vm243 = vcmask 3072
  %244 = vst.msk [vmem:[%s4 + $0x10] sm:$0xf] %vm243, %v239
  // Predicated region
  $region22: #{tpu_custom_call.1} parent=0 // pred_check
    _
  $region23: #{tpu_custom_call.1} parent=0 // pred_check_branch
    %246 = sbr.rel (0) target = $region25
  $region24: #{tpu_custom_call.1} parent=0 // pred_region
    _
  $region25: #{tpu_custom_call.1} parent=0 // pred_fallthru
    _
  // Predicated region
  $region26: #{tpu_custom_call.1} parent=0 // pred_check
    _
  $region27: #{tpu_custom_call.1} parent=0 // pred_check_branch
    %248 = sbr.rel (0) target = $region29
  $region28: #{tpu_custom_call.1} parent=0 // pred_region
    _
  $region29: #{tpu_custom_call.1} parent=0 // pred_fallthru
    _

</llo_original>
